<compile_context>
chip_gen: v7x
topology: tpu7x:2x2x1
jax: 0.10.0
libtpu: 0.0.40
codegen_flags: <defaults>
</compile_context>

<pallas_src>
import jax
import jax.numpy as jnp
from jax import lax
from jax.experimental import pallas as pl
from jax.experimental.pallas import tpu as pltpu


def _embed_kernel(idx_ref, table_ref, out_ref):
    # idx_ref:   (tile_rows, pack)     int32   pre-offset packed indices; invalid == -1
    # table_ref: (pack*T, pack*D)      float   block-diagonal replicated embedding table
    # out_ref:   (tile_rows, pack*D)   float   `pack` embeddings per row (lane dense)
    tile_rows, pack = idx_ref.shape
    pt = table_ref.shape[0]  # pack * num_types

    idx = idx_ref[...]
    col = lax.broadcasted_iota(jnp.int32, (tile_rows, pt), dimension=1)
    # Indices were pre-offset by j*num_types per slot in the wrapper, and invalid
    # entries were mapped to -1, so each row hits at most one column per slot and
    # slots never collide.  Accumulate as bool, cast once.
    hit = idx[:, 0:1] == col
    for j in range(1, pack):
        hit = jnp.logical_or(hit, idx[:, j : j + 1] == col)
    onehot = hit.astype(table_ref.dtype)

    out_ref[...] = jnp.dot(
        onehot, table_ref[...], preferred_element_type=jnp.float32
    ).astype(out_ref.dtype)


def _round_up(a, b):
    return -(-a // b) * b


def type_dict_edge_encoder(edge_attr, emb_table, *, tile_e=32768, out_dtype=None):
    """Pallas equivalent of TypeDictEdgeEncoder.forward on batch.edge_attr.

    edge_attr: int [E]        edge type indices
    emb_table: float [T, D]   embedding weights
    returns:   float [E, D]   (out_dtype, default = emb_table.dtype; pass bf16 to halve
                               HBM writeback if the consumer tolerates it)

    Out-of-range / negative indices yield an all-zero row (torch.nn.Embedding raises).
    """
    num_types, emb_dim = emb_table.shape
    num_edges = int(edge_attr.shape[0])
    out_dtype = emb_table.dtype if out_dtype is None else out_dtype

    # Lane-dense packing: `pack` edges per output row so the output last dim is 128.
    # For very large num_types the pack*T one-hot / block-diag table would blow up
    # VMEM and the MXU K dim, so fall back to pack=1 (perf cliff: masked stores when
    # emb_dim < 128 — acceptable only for big-T configs).
    if emb_dim <= 128 and 128 % emb_dim == 0 and num_types * (128 // emb_dim) <= 2048:
        pack = 128 // emb_dim
    else:
        pack = 1

    # --- pack indices: rows of `pack` edges; tiny pad (< pack) with invalid marker. ---
    rows = -(-num_edges // pack)
    e_pack = rows * pack
    idx = edge_attr.astype(jnp.int32).reshape(-1)
    if e_pack != num_edges:
        idx = jnp.concatenate(
            [idx, jnp.full((e_pack - num_edges,), -1, dtype=jnp.int32)]
        )
    idx2d = idx.reshape(rows, pack)

    # Ensure the array has at least 8 rows so the (8-multiple) block never exceeds it.
    rows_arr = rows
    if rows_arr < 8:
        idx2d = jnp.concatenate(
            [idx2d, jnp.full((8 - rows_arr, pack), -1, dtype=jnp.int32)], axis=0
        )
        rows_arr = 8

    # Mask invalid indices and pre-add the per-slot column offset (j * num_types) so the
    # kernel does a single compare per slot.  Invalid -> -1 never matches any column.
    offsets = (jnp.arange(pack, dtype=jnp.int32) * num_types)[None, :]
    valid = (idx2d >= 0) & (idx2d < num_types)
    packed_idx = jnp.where(valid, idx2d + offsets, jnp.int32(-1))

    # Block-diagonal replicated table: row j*T + t holds emb[t] in cols [j*D, (j+1)*D).
    if pack > 1:
        eye = jnp.eye(pack, dtype=emb_table.dtype)
        big_table = jnp.einsum("pq,td->ptqd", eye, emb_table).reshape(
            pack * num_types, pack * emb_dim
        )
    else:
        big_table = emb_table
    out_cols = pack * emb_dim

    # --- tile selection: big tiles for roofline, >= 2 grid steps when E allows. ---
    tile_rows = max(8, (tile_e // pack) // 8 * 8)
    if rows_arr >= 16:
        tile_rows = min(tile_rows, _round_up(-(-rows_arr // 2), 8))  # ~half -> 2 steps
    tile_rows = min(tile_rows, max(8, rows_arr // 8 * 8))  # block never exceeds array
    grid = (-(-rows_arr // tile_rows),)

    # Scoped-VMEM budget: double-buffered idx + out blocks (dominant), resident table,
    # plus headroom; capped well below v7x's 64 MiB physical VMEM.
    blk_in = tile_rows * pack * 4
    blk_out = tile_rows * out_cols * jnp.dtype(out_dtype).itemsize
    tbl_bytes = big_table.size * jnp.dtype(emb_table.dtype).itemsize
    needed = 2 * (blk_in + blk_out) + tbl_bytes + (2 << 20)
    vmem_limit = int(min(max(needed, 4 << 20), 48 << 20))

    out = pl.pallas_call(
        _embed_kernel,
        out_shape=jax.ShapeDtypeStruct((rows_arr, out_cols), out_dtype),
        grid_spec=pltpu.PrefetchScalarGridSpec(
            num_scalar_prefetch=0,
            grid=grid,
            in_specs=[
                pl.BlockSpec((tile_rows, pack), lambda i: (i, 0)),
                pl.BlockSpec((pack * num_types, out_cols), lambda i: (0, 0)),
            ],
            out_specs=pl.BlockSpec((tile_rows, out_cols), lambda i: (i, 0)),
        ),
        compiler_params=pltpu.CompilerParams(
            dimension_semantics=("parallel",),
            vmem_limit_bytes=vmem_limit,
        ),
    )(packed_idx, big_table)

    # Contiguous reshape back to one embedding per edge (free under XLA); crop only when
    # E is not a multiple of `pack` (rare; fuses away under jit in the caller).
    out = out.reshape(rows_arr * pack, emb_dim)
    if rows_arr * pack != num_edges:
        out = out[:num_edges]
    return out


if __name__ == "__main__":
    # Synthetic config (cfg.dataset.edge_encoder_num_types) and emb_dim.
    num_types = 8
    emb_dim = 32
    num_edges = 2000

    key = jax.random.PRNGKey(0)
    k_tbl, k_idx, k_idx2 = jax.random.split(key, 3)

    # Deterministic parameter init (mimics nn.Embedding's N(0,1) init).
    emb_table = jax.random.normal(k_tbl, (num_types, emb_dim), dtype=jnp.float32)
    edge_attr = jax.random.randint(k_idx, (num_edges,), 0, num_types, dtype=jnp.int32)

    out = jax.block_until_ready(type_dict_edge_encoder(edge_attr, emb_table))

    # Reference check against plain-JAX embedding lookup (exact for in-range indices).
    ref = emb_table[edge_attr]
    assert out.shape == (num_edges, emb_dim)
    assert jnp.allclose(out, ref, atol=1e-6), "mismatch vs reference gather"

    # Secondary check: out-of-range / negative indices produce all-zero rows and do NOT
    # corrupt neighboring packed edges (documented divergence from torch, which raises).
    e2 = 64
    idx2 = jax.random.randint(k_idx2, (e2,), 0, num_types, dtype=jnp.int32)
    idx2 = idx2.at[3].set(-5).at[17].set(num_types).at[40].set(num_types + 7)
    out2 = jax.block_until_ready(type_dict_edge_encoder(idx2, emb_table))
    valid2 = (idx2 >= 0) & (idx2 < num_types)
    ref2 = jnp.where(valid2[:, None], emb_table[jnp.clip(idx2, 0, num_types - 1)], 0.0)
    assert jnp.allclose(out2, ref2, atol=1e-6), "invalid-index handling mismatch"

    print("KERNEL_OK")
</pallas_src>

<mosaic_0001>
module attributes {stable_mosaic.version = 11 : i64} {
  func.func @_embed_kernel(%arg0: i32, %arg1: memref<256x4xi32, #tpu.memory_space<vmem>>, %arg2: memref<32x128xf32, #tpu.memory_space<vmem>>, %arg3: memref<256x128xf32, #tpu.memory_space<vmem>>) attributes {dimension_semantics = [#tpu.dimension_semantics<parallel>], iteration_bounds = array<i64: 2>, scalar_prefetch = 0 : i64, scratch_operands = 0 : i64, tpu.core_type = #tpu.core_type<tc>, window_params = [{transform_indices = @transform_0, window_bounds = array<i64: 256, 4>}, {pipeline_mode = #tpu.pipeline_mode<synchronous>, transform_indices = @transform_1, window_bounds = array<i64: 32, 128>}, {transform_indices = @transform_2, window_bounds = array<i64: 256, 128>}]} {
    %c0 = arith.constant 0 : index
    %c0_0 = arith.constant 0 : index
    %0 = vector.load %arg1[%c0, %c0_0] : memref<256x4xi32, #tpu.memory_space<vmem>>, vector<256x4xi32>
    %1 = tpu.iota {dimensions = array<i32: 1>} : vector<256x32xi32>
    %2 = vector.extract_strided_slice %0 {offsets = [0, 0], sizes = [256, 1], strides = [1, 1]} : vector<256x4xi32> to vector<256x1xi32>
    %3 = vector.broadcast %2 : vector<256x1xi32> to vector<256x32xi32>
    %4 = arith.cmpi eq, %3, %1 : vector<256x32xi32>
    %5 = vector.extract_strided_slice %0 {offsets = [0, 1], sizes = [256, 1], strides = [1, 1]} : vector<256x4xi32> to vector<256x1xi32>
    %6 = vector.broadcast %5 : vector<256x1xi32> to vector<256x32xi32>
    %7 = arith.cmpi eq, %6, %1 : vector<256x32xi32>
    %8 = arith.ori %4, %7 : vector<256x32xi1>
    %9 = vector.extract_strided_slice %0 {offsets = [0, 2], sizes = [256, 1], strides = [1, 1]} : vector<256x4xi32> to vector<256x1xi32>
    %10 = vector.broadcast %9 : vector<256x1xi32> to vector<256x32xi32>
    %11 = arith.cmpi eq, %10, %1 : vector<256x32xi32>
    %12 = arith.ori %8, %11 : vector<256x32xi1>
    %13 = vector.extract_strided_slice %0 {offsets = [0, 3], sizes = [256, 1], strides = [1, 1]} : vector<256x4xi32> to vector<256x1xi32>
    %14 = vector.broadcast %13 : vector<256x1xi32> to vector<256x32xi32>
    %15 = arith.cmpi eq, %14, %1 : vector<256x32xi32>
    %16 = arith.ori %12, %15 : vector<256x32xi1>
    %17 = arith.extui %16 : vector<256x32xi1> to vector<256x32xi32>
    %18 = arith.sitofp %17 : vector<256x32xi32> to vector<256x32xf32>
    %c0_1 = arith.constant 0 : index
    %c0_2 = arith.constant 0 : index
    %19 = vector.load %arg2[%c0_1, %c0_2] : memref<32x128xf32, #tpu.memory_space<vmem>>, vector<32x128xf32>
    %cst = arith.constant dense<0.000000e+00> : vector<256x128xf32>
    %20 = tpu.matmul %18, %19, %cst {dimension_numbers = #tpu.dot_dimension_numbers<[1], [0], [0], [1], [0, 0, 1, 1], [], []>} : vector<256x32xf32>, vector<32x128xf32>, vector<256x128xf32> -> vector<256x128xf32>
    %c0_3 = arith.constant 0 : index
    %c0_4 = arith.constant 0 : index
    %21 = vector.load %arg3[%c0_3, %c0_4] : memref<256x128xf32, #tpu.memory_space<vmem>>, vector<256x128xf32>
    tpu.vector_store %arg3[%c0_3, %c0_4], %20 {strides = array<i32>} : memref<256x128xf32, #tpu.memory_space<vmem>>, vector<256x128xf32>,
    return
  }
  func.func @transform_0(%arg0: i32) -> (i32, i32) {
    %c0_i32 = arith.constant 0 : i32
    %c0_i32_0 = arith.constant 0 : i32
    return %arg0, %c0_i32 : i32, i32
  }
  func.func @transform_1(%arg0: i32) -> (i32, i32) {
    %c0_i32 = arith.constant 0 : i32
    %c0_i32_0 = arith.constant 0 : i32
    %c0_i32_1 = arith.constant 0 : i32
    return %c0_i32, %c0_i32_0 : i32, i32
  }
  func.func @transform_2(%arg0: i32) -> (i32, i32) {
    %c0_i32 = arith.constant 0 : i32
    %c0_i32_0 = arith.constant 0 : i32
    return %arg0, %c0_i32 : i32, i32
  }
}

</mosaic_0001>

<llo_original>
// kernel: tpu_custom_call.1
$region0: #{tpu_custom_call.1}
  #allocation0 [shape = 'u32[]', space=smem, size = 0x4, offset = 0x4, fixed_abs, tag = 'smem constant byte address 0x4 - core index']
  #allocation1 [shape = 'u32[144,128]{1,0:T(1,128)}', space=vmem, size = 0x12000, scoped, tag = 'internal scratch']
  %s0 = inlined_call_operand.vmem [shape: s32[500,4], index: 0, kind: input, shape index: {}]
  %s1 = inlined_call_operand.vmem [shape: f32[32,128], index: 1, kind: input, shape index: {}]
  %s2 = inlined_call_operand.hbm [shape: f32[500,128], index: 2, kind: output, shape index: {}]
  %s3 = sld [smem:[#allocation0]]
  $region41: #{tpu_custom_call.1} parent=0
    _
  %s5 = ssub.s32 1, %s3
  %s6 = scalar_select 0, %s5, %s3
  $region1: #{tpu_custom_call.1} parent=0
    #allocation2 [shape = 'u8[262144]{0}', space=vmem, size = 0x40000, scoped, tag = 'output window, operand 0']
    #allocation3 [shape = 's32[2]{0}', space=sflag, size = 0x8, scoped, tag = 'scoped memory for tpu_custom_call.1']
    %7 = vsyncpa [#allocation3], 0
    %s8 = scalar_lea.sflag [#allocation3], 1
    %9 = vsyncpa %s8, 0
    loop: start=0, step=1, limit=4
    $region2: #{tpu_custom_call.1} parent=1 // loop_pre_header
      _
    $region3: #{tpu_custom_call.1} parent=1 // loop_header
      %s11 = sphi 0, %s15
      %p12 = scmp.ge.s32.totalorder %s11, 4
      %s21 = sphi 0, %s23
      %s24 = sphi 0, %s21
      %s25 = sphi 0, %s24
      %s41 = sphi 0, %s25
      %s45 = sphi 0, %s45
      %s47 = sphi 0, %s45
      %s48 = sphi 0, %s47
      %s62 = sphi 0, %s48
      %s68 = sphi 0, %s70
      %s71 = sphi 0, %s68
      %s72 = sphi 0, %s71
      %s88 = sphi 0, %s72
    $region4: #{tpu_custom_call.1} parent=1 // loop_header_branch
      %14 = sbr.rel (%p12) target = $region8
    $region5: #{tpu_custom_call.1} parent=1 // loop_body
      %s16 = ssub.s32 %s11, 1
      %s17 = ssub.s32 %s11, 2
      %s18 = sadd.s32 %s11, 1
      %s19 = ssub.s32 %s11, %s18
      %p20 = scmp.eq.s32.totalorder %s19, 0
      %s22 = sadd.s32 %s21, 1
      %s23 = scalar_select %p20, %s21, %s22
      %p26 = pneg %p20
      %p27 = scmp.eq.s32.totalorder %s11, 1
      %p28 = por %p26, %p27
      %p29 = scmp.ne.s32.totalorder %s21, %s24
      %p30 = scmp.eq.s32.totalorder %s11, 0
      %p31 = por %p29, %p30
      %p32 = scmp.ne.s32.totalorder %s21, %s24
      %p33 = scmp.eq.s32.totalorder %s16, 1
      %p34 = por %p32, %p33
      %p35 = scmp.ne.s32.totalorder %s24, %s25
      %p36 = scmp.eq.s32.totalorder %s16, 0
      %p37 = por %p35, %p36
      %p38 = scmp.ne.s32.totalorder %s24, %s25
      %p39 = scmp.eq.s32.totalorder %s17, 1
      %p40 = por %p38, %p39
      %p42 = scmp.ne.s32.totalorder %s25, %s41
      %p43 = scmp.eq.s32.totalorder %s17, 0
      %p44 = por %p42, %p43
      %s46 = sadd.s32 %s45, 1
      %p49 = scmp.eq.s32.totalorder %s11, 1
      %p50 = scmp.ne.s32.totalorder %s45, %s47
      %p51 = scmp.eq.s32.totalorder %s11, 0
      %p52 = por %p50, %p51
      %p53 = scmp.ne.s32.totalorder %s45, %s47
      %p54 = scmp.eq.s32.totalorder %s16, 1
      %p55 = por %p53, %p54
      %p56 = scmp.ne.s32.totalorder %s47, %s48
      %p57 = scmp.eq.s32.totalorder %s16, 0
      %p58 = por %p56, %p57
      %p59 = scmp.ne.s32.totalorder %s47, %s48
      %p60 = scmp.eq.s32.totalorder %s17, 1
      %p61 = por %p59, %p60
      %p63 = scmp.ne.s32.totalorder %s48, %s62
      %p64 = scmp.eq.s32.totalorder %s17, 0
      %p65 = por %p63, %p64
      %s66 = ssub.s32 %s11, %s18
      %p67 = scmp.eq.s32.totalorder %s66, 0
      %s69 = sadd.s32 %s68, 1
      %s70 = scalar_select %p67, %s68, %s69
      %p73 = pneg %p67
      %p74 = scmp.eq.s32.totalorder %s11, 1
      %p75 = por %p73, %p74
      %p76 = scmp.ne.s32.totalorder %s68, %s71
      %p77 = scmp.eq.s32.totalorder %s11, 0
      %p78 = por %p76, %p77
      %p79 = scmp.ne.s32.totalorder %s68, %s71
      %p80 = scmp.eq.s32.totalorder %s16, 1
      %p81 = por %p79, %p80
      %p82 = scmp.ne.s32.totalorder %s71, %s72
      %p83 = scmp.eq.s32.totalorder %s16, 0
      %p84 = por %p82, %p83
      %p85 = scmp.ne.s32.totalorder %s71, %s72
      %p86 = scmp.eq.s32.totalorder %s17, 1
      %p87 = por %p85, %p86
      %p89 = scmp.ne.s32.totalorder %s72, %s88
      %p90 = scmp.eq.s32.totalorder %s17, 0
      %p91 = por %p89, %p90
      %p92 = scmp.le.s32.totalorder 1, %s11
      %p93 = scmp.lt.s32.totalorder %s11, 3
      %p94 = pnand %p92, %p93
      %p95 = pneg %p94
      // Predicated region
      $region9: #{tpu_custom_call.1} parent=5 // pred_check
        _
      $region10: #{tpu_custom_call.1} parent=5 // pred_check_branch
        %97 = sbr.rel (%p94) target = $region12
      $region11: #{tpu_custom_call.1} parent=5 // pred_region
        %s98 = ssub.s32 %s11, 1
        // Predicated region
        $region13: #{tpu_custom_call.1} parent=11 // pred_check
          %p99 = pneg %p58
        $region14: #{tpu_custom_call.1} parent=11 // pred_check_branch
          %101 = sbr.rel (%p99) target = $region16
        $region15: #{tpu_custom_call.1} parent=11 // pred_region
          _
        $region16: #{tpu_custom_call.1} parent=11 // pred_fallthru
          _
      $region12: #{tpu_custom_call.1} parent=5 // pred_fallthru
        _
      %p102 = scmp.lt.s32.totalorder %s11, 2
      // Predicated region
      $region17: #{tpu_custom_call.1} parent=5 // pred_check
        %p103 = pneg %p102
      $region18: #{tpu_custom_call.1} parent=5 // pred_check_branch
        %105 = sbr.rel (%p103) target = $region20
      $region19: #{tpu_custom_call.1} parent=5 // pred_region
        // Predicated region
        $region21: #{tpu_custom_call.1} parent=19 // pred_check
          %p106 = pneg %p31
        $region22: #{tpu_custom_call.1} parent=19 // pred_check_branch
          %108 = sbr.rel (%p106) target = $region24
        $region23: #{tpu_custom_call.1} parent=19 // pred_region
          %s109 = smul.u32 32, %s11
          %s110 = ssub.s32 63, %s109
          %p111 = scmp.lt.s32.totalorder %s110, 32
          %s112 = scalar_select %p111, %s110, 32
          %s113 = smul.u32 128, %s112
          %p114 = scmp.lt.s32.totalorder %s109, 62
          %s115 = scalar_select %p114, %s109, 62
          %s116 = smul.addr %s115, 8
          %s117 = scalar_lea.vmem %s0, %s116
          %s118 = smul.u32 32, %s11
          %s119 = ssub.s32 63, %s118
          %p120 = scmp.lt.s32.totalorder %s119, 32
          %s121 = scalar_select %p120, %s119, 32
          %s122 = smul.u32 128, %s121
        $region24: #{tpu_custom_call.1} parent=19 // pred_fallthru
          _
      $region20: #{tpu_custom_call.1} parent=5 // pred_fallthru
        _
      %p123 = scmp.le.s32.totalorder 1, %s11
      %p124 = scmp.lt.s32.totalorder %s11, 3
      %p125 = pnand %p123, %p124
      %p126 = pneg %p125
      // Predicated region
      $region25: #{tpu_custom_call.1} parent=5 // pred_check
        _
      $region26: #{tpu_custom_call.1} parent=5 // pred_check_branch
        %128 = sbr.rel (%p125) target = $region28
      $region27: #{tpu_custom_call.1} parent=5 // pred_region
        %s129 = ssub.s32 %s11, 1
        %s130 = smul.u32 32, %s16
        %s131 = ssub.s32 63, %s130
        %p132 = scmp.lt.s32.totalorder %s131, 32
        %s133 = scalar_select %p132, %s131, 32
        %s134 = smul.u32 128, %s133
        %p135 = scmp.lt.s32.totalorder %s130, 62
        %s136 = scalar_select %p135, %s130, 62
        %s137 = smul.addr %s136, 8
        %s138 = scalar_lea.vmem %s0, %s137
        %p139 = pneg %p37
        %p140 = pneg %p34
        %p141 = pneg %p58
        %p142 = pneg %p55
        %p143 = pneg %p84
        %p144 = pneg %p81
        %s145 = sand.u32 %s71, 1
        %s146 = scalar_lea.sflag [#allocation3], %s145
        %s147 = sand.u32 %s71, 1
        %s148 = smul.addr %s147, 256
        %s149 = scalar_lea.vmem [#allocation2], %s148
        %s150 = smul.u32 32, %s16
        %s151 = ssub.s32 63, %s150
        %p152 = scmp.lt.s32.totalorder %s151, 32
        %s153 = scalar_select %p152, %s151, 32
        %s154 = smul.u32 128, %s153
        %p155 = scmp.lt.s32.totalorder %s150, 62
        %s156 = scalar_select %p155, %s150, 62
        %s157 = smul.addr %s156, 8
        %s158 = scalar_lea.vmem %s0, %s157
        %s159 = smul.u32 32, %s16
        %s160 = ssub.s32 63, %s159
        %p161 = scmp.lt.s32.totalorder %s160, 32
        %s162 = scalar_select %p161, %s160, 32
        %s163 = smul.u32 128, %s162
        %s164 = smul.u32 32, %s16
        %s165 = ssub.s32 63, %s164
        %p166 = scmp.lt.s32.totalorder %s165, 32
        %s167 = scalar_select %p166, %s165, 32
        %s168 = smul.u32 128, %s167
        %v169 = vld [vmem:[%s158] sm:$0xff]
        %v170 = vld [vmem:[%s158 + $0x8] sm:$0xff]
        %v171 = vld [vmem:[%s158 + $0x10] sm:$0xff]
        %v172 = vld [vmem:[%s158 + $0x18] sm:$0xff]
        %v173 = vld [vmem:[%s158 + $0x20] sm:$0xff]
        %v174 = vld [vmem:[%s158 + $0x28] sm:$0xff]
        %v175 = vld [vmem:[%s158 + $0x30] sm:$0xff]
        %v176 = vld [vmem:[%s158 + $0x38] sm:$0xff]
        %v177 = vld [vmem:[%s158 + $0x40] sm:$0xff]
        %v178 = vld [vmem:[%s158 + $0x48] sm:$0xff]
        %v179 = vld [vmem:[%s158 + $0x50] sm:$0xff]
        %v180 = vld [vmem:[%s158 + $0x58] sm:$0xff]
        %v181 = vld [vmem:[%s158 + $0x60] sm:$0xff]
        %v182 = vld [vmem:[%s158 + $0x68] sm:$0xff]
        %v183 = vld [vmem:[%s158 + $0x70] sm:$0xff]
        %v184 = vld [vmem:[%s158 + $0x78] sm:$0xff]
        %v185 = vld [vmem:[%s158 + $0x80] sm:$0xff]
        %v186 = vld [vmem:[%s158 + $0x88] sm:$0xff]
        %v187 = vld [vmem:[%s158 + $0x90] sm:$0xff]
        %v188 = vld [vmem:[%s158 + $0x98] sm:$0xff]
        %v189 = vld [vmem:[%s158 + $0xa0] sm:$0xff]
        %v190 = vld [vmem:[%s158 + $0xa8] sm:$0xff]
        %v191 = vld [vmem:[%s158 + $0xb0] sm:$0xff]
        %v192 = vld [vmem:[%s158 + $0xb8] sm:$0xff]
        %v193 = vld [vmem:[%s158 + $0xc0] sm:$0xff]
        %v194 = vld [vmem:[%s158 + $0xc8] sm:$0xff]
        %v195 = vld [vmem:[%s158 + $0xd0] sm:$0xff]
        %v196 = vld [vmem:[%s158 + $0xd8] sm:$0xff]
        %v197 = vld [vmem:[%s158 + $0xe0] sm:$0xff]
        %v198 = vld [vmem:[%s158 + $0xe8] sm:$0xff]
        %v199 = vld [vmem:[%s158 + $0xf0] sm:$0xff]
        %v200 = vld [vmem:[%s158 + $0xf8] sm:$0xff]
        %v201 = vlaneseq
        %v202 = vand.u32 %v201, 127
        %203 = vset.pattern.permute.xlu0 0
        %204 = vperm.xlu0 %203, %v169
        %v205 = vpop.permute.xlu0 %204
        %206 = vset.pattern.permute.xlu0 0
        %207 = vperm.xlu0 %206, %v170
        %v208 = vpop.permute.xlu0 %207
        %209 = vset.pattern.permute.xlu0 0
        %210 = vperm.xlu0 %209, %v171
        %v211 = vpop.permute.xlu0 %210
        %212 = vset.pattern.permute.xlu0 0
        %213 = vperm.xlu0 %212, %v172
        %v214 = vpop.permute.xlu0 %213
        %215 = vset.pattern.permute.xlu0 0
        %216 = vperm.xlu0 %215, %v173
        %v217 = vpop.permute.xlu0 %216
        %218 = vset.pattern.permute.xlu0 0
        %219 = vperm.xlu0 %218, %v174
        %v220 = vpop.permute.xlu0 %219
        %221 = vset.pattern.permute.xlu0 0
        %222 = vperm.xlu0 %221, %v175
        %v223 = vpop.permute.xlu0 %222
        %224 = vset.pattern.permute.xlu0 0
        %225 = vperm.xlu0 %224, %v176
        %v226 = vpop.permute.xlu0 %225
        %227 = vset.pattern.permute.xlu0 0
        %228 = vperm.xlu0 %227, %v177
        %v229 = vpop.permute.xlu0 %228
        %230 = vset.pattern.permute.xlu0 0
        %231 = vperm.xlu0 %230, %v178
        %v232 = vpop.permute.xlu0 %231
        %233 = vset.pattern.permute.xlu0 0
        %234 = vperm.xlu0 %233, %v179
        %v235 = vpop.permute.xlu0 %234
        %236 = vset.pattern.permute.xlu0 0
        %237 = vperm.xlu0 %236, %v180
        %v238 = vpop.permute.xlu0 %237
        %239 = vset.pattern.permute.xlu0 0
        %240 = vperm.xlu0 %239, %v181
        %v241 = vpop.permute.xlu0 %240
        %242 = vset.pattern.permute.xlu0 0
        %243 = vperm.xlu0 %242, %v182
        %v244 = vpop.permute.xlu0 %243
        %245 = vset.pattern.permute.xlu0 0
        %246 = vperm.xlu0 %245, %v183
        %v247 = vpop.permute.xlu0 %246
        %248 = vset.pattern.permute.xlu0 0
        %249 = vperm.xlu0 %248, %v184
        %v250 = vpop.permute.xlu0 %249
        %251 = vset.pattern.permute.xlu0 0
        %252 = vperm.xlu0 %251, %v185
        %v253 = vpop.permute.xlu0 %252
        %254 = vset.pattern.permute.xlu0 0
        %255 = vperm.xlu0 %254, %v186
        %v256 = vpop.permute.xlu0 %255
        %257 = vset.pattern.permute.xlu0 0
        %258 = vperm.xlu0 %257, %v187
        %v259 = vpop.permute.xlu0 %258
        %260 = vset.pattern.permute.xlu0 0
        %261 = vperm.xlu0 %260, %v188
        %v262 = vpop.permute.xlu0 %261
        %263 = vset.pattern.permute.xlu0 0
        %264 = vperm.xlu0 %263, %v189
        %v265 = vpop.permute.xlu0 %264
        %266 = vset.pattern.permute.xlu0 0
        %267 = vperm.xlu0 %266, %v190
        %v268 = vpop.permute.xlu0 %267
        %269 = vset.pattern.permute.xlu0 0
        %270 = vperm.xlu0 %269, %v191
        %v271 = vpop.permute.xlu0 %270
        %272 = vset.pattern.permute.xlu0 0
        %273 = vperm.xlu0 %272, %v192
        %v274 = vpop.permute.xlu0 %273
        %275 = vset.pattern.permute.xlu0 0
        %276 = vperm.xlu0 %275, %v193
        %v277 = vpop.permute.xlu0 %276
        %278 = vset.pattern.permute.xlu0 0
        %279 = vperm.xlu0 %278, %v194
        %v280 = vpop.permute.xlu0 %279
        %281 = vset.pattern.permute.xlu0 0
        %282 = vperm.xlu0 %281, %v195
        %v283 = vpop.permute.xlu0 %282
        %284 = vset.pattern.permute.xlu0 0
        %285 = vperm.xlu0 %284, %v196
        %v286 = vpop.permute.xlu0 %285
        %287 = vset.pattern.permute.xlu0 0
        %288 = vperm.xlu0 %287, %v197
        %v289 = vpop.permute.xlu0 %288
        %290 = vset.pattern.permute.xlu0 0
        %291 = vperm.xlu0 %290, %v198
        %v292 = vpop.permute.xlu0 %291
        %293 = vset.pattern.permute.xlu0 0
        %294 = vperm.xlu0 %293, %v199
        %v295 = vpop.permute.xlu0 %294
        %296 = vset.pattern.permute.xlu0 0
        %297 = vperm.xlu0 %296, %v200
        %v298 = vpop.permute.xlu0 %297
        %vm299 = vcmp.eq.s32.totalorder %v205, %v202
        %vm300 = vcmp.eq.s32.totalorder %v208, %v202
        %vm301 = vcmp.eq.s32.totalorder %v211, %v202
        %vm302 = vcmp.eq.s32.totalorder %v214, %v202
        %vm303 = vcmp.eq.s32.totalorder %v217, %v202
        %vm304 = vcmp.eq.s32.totalorder %v220, %v202
        %vm305 = vcmp.eq.s32.totalorder %v223, %v202
        %vm306 = vcmp.eq.s32.totalorder %v226, %v202
        %vm307 = vcmp.eq.s32.totalorder %v229, %v202
        %vm308 = vcmp.eq.s32.totalorder %v232, %v202
        %vm309 = vcmp.eq.s32.totalorder %v235, %v202
        %vm310 = vcmp.eq.s32.totalorder %v238, %v202
        %vm311 = vcmp.eq.s32.totalorder %v241, %v202
        %vm312 = vcmp.eq.s32.totalorder %v244, %v202
        %vm313 = vcmp.eq.s32.totalorder %v247, %v202
        %vm314 = vcmp.eq.s32.totalorder %v250, %v202
        %vm315 = vcmp.eq.s32.totalorder %v253, %v202
        %vm316 = vcmp.eq.s32.totalorder %v256, %v202
        %vm317 = vcmp.eq.s32.totalorder %v259, %v202
        %vm318 = vcmp.eq.s32.totalorder %v262, %v202
        %vm319 = vcmp.eq.s32.totalorder %v265, %v202
        %vm320 = vcmp.eq.s32.totalorder %v268, %v202
        %vm321 = vcmp.eq.s32.totalorder %v271, %v202
        %vm322 = vcmp.eq.s32.totalorder %v274, %v202
        %vm323 = vcmp.eq.s32.totalorder %v277, %v202
        %vm324 = vcmp.eq.s32.totalorder %v280, %v202
        %vm325 = vcmp.eq.s32.totalorder %v283, %v202
        %vm326 = vcmp.eq.s32.totalorder %v286, %v202
        %vm327 = vcmp.eq.s32.totalorder %v289, %v202
        %vm328 = vcmp.eq.s32.totalorder %v292, %v202
        %vm329 = vcmp.eq.s32.totalorder %v295, %v202
        %vm330 = vcmp.eq.s32.totalorder %v298, %v202
        %331 = vset.pattern.permute.xlu0 1
        %332 = vperm.xlu0 %331, %v169
        %v333 = vpop.permute.xlu0 %332
        %334 = vset.pattern.permute.xlu0 1
        %335 = vperm.xlu0 %334, %v170
        %v336 = vpop.permute.xlu0 %335
        %337 = vset.pattern.permute.xlu0 1
        %338 = vperm.xlu0 %337, %v171
        %v339 = vpop.permute.xlu0 %338
        %340 = vset.pattern.permute.xlu0 1
        %341 = vperm.xlu0 %340, %v172
        %v342 = vpop.permute.xlu0 %341
        %343 = vset.pattern.permute.xlu0 1
        %344 = vperm.xlu0 %343, %v173
        %v345 = vpop.permute.xlu0 %344
        %346 = vset.pattern.permute.xlu0 1
        %347 = vperm.xlu0 %346, %v174
        %v348 = vpop.permute.xlu0 %347
        %349 = vset.pattern.permute.xlu0 1
        %350 = vperm.xlu0 %349, %v175
        %v351 = vpop.permute.xlu0 %350
        %352 = vset.pattern.permute.xlu0 1
        %353 = vperm.xlu0 %352, %v176
        %v354 = vpop.permute.xlu0 %353
        %355 = vset.pattern.permute.xlu0 1
        %356 = vperm.xlu0 %355, %v177
        %v357 = vpop.permute.xlu0 %356
        %358 = vset.pattern.permute.xlu0 1
        %359 = vperm.xlu0 %358, %v178
        %v360 = vpop.permute.xlu0 %359
        %361 = vset.pattern.permute.xlu0 1
        %362 = vperm.xlu0 %361, %v179
        %v363 = vpop.permute.xlu0 %362
        %364 = vset.pattern.permute.xlu0 1
        %365 = vperm.xlu0 %364, %v180
        %v366 = vpop.permute.xlu0 %365
        %367 = vset.pattern.permute.xlu0 1
        %368 = vperm.xlu0 %367, %v181
        %v369 = vpop.permute.xlu0 %368
        %370 = vset.pattern.permute.xlu0 1
        %371 = vperm.xlu0 %370, %v182
        %v372 = vpop.permute.xlu0 %371
        %373 = vset.pattern.permute.xlu0 1
        %374 = vperm.xlu0 %373, %v183
        %v375 = vpop.permute.xlu0 %374
        %376 = vset.pattern.permute.xlu0 1
        %377 = vperm.xlu0 %376, %v184
        %v378 = vpop.permute.xlu0 %377
        %379 = vset.pattern.permute.xlu0 1
        %380 = vperm.xlu0 %379, %v185
        %v381 = vpop.permute.xlu0 %380
        %382 = vset.pattern.permute.xlu0 1
        %383 = vperm.xlu0 %382, %v186
        %v384 = vpop.permute.xlu0 %383
        %385 = vset.pattern.permute.xlu0 1
        %386 = vperm.xlu0 %385, %v187
        %v387 = vpop.permute.xlu0 %386
        %388 = vset.pattern.permute.xlu0 1
        %389 = vperm.xlu0 %388, %v188
        %v390 = vpop.permute.xlu0 %389
        %391 = vset.pattern.permute.xlu0 1
        %392 = vperm.xlu0 %391, %v189
        %v393 = vpop.permute.xlu0 %392
        %394 = vset.pattern.permute.xlu0 1
        %395 = vperm.xlu0 %394, %v190
        %v396 = vpop.permute.xlu0 %395
        %397 = vset.pattern.permute.xlu0 1
        %398 = vperm.xlu0 %397, %v191
        %v399 = vpop.permute.xlu0 %398
        %400 = vset.pattern.permute.xlu0 1
        %401 = vperm.xlu0 %400, %v192
        %v402 = vpop.permute.xlu0 %401
        %403 = vset.pattern.permute.xlu0 1
        %404 = vperm.xlu0 %403, %v193
        %v405 = vpop.permute.xlu0 %404
        %406 = vset.pattern.permute.xlu0 1
        %407 = vperm.xlu0 %406, %v194
        %v408 = vpop.permute.xlu0 %407
        %409 = vset.pattern.permute.xlu0 1
        %410 = vperm.xlu0 %409, %v195
        %v411 = vpop.permute.xlu0 %410
        %412 = vset.pattern.permute.xlu0 1
        %413 = vperm.xlu0 %412, %v196
        %v414 = vpop.permute.xlu0 %413
        %415 = vset.pattern.permute.xlu0 1
        %416 = vperm.xlu0 %415, %v197
        %v417 = vpop.permute.xlu0 %416
        %418 = vset.pattern.permute.xlu0 1
        %419 = vperm.xlu0 %418, %v198
        %v420 = vpop.permute.xlu0 %419
        %421 = vset.pattern.permute.xlu0 1
        %422 = vperm.xlu0 %421, %v199
        %v423 = vpop.permute.xlu0 %422
        %424 = vset.pattern.permute.xlu0 1
        %425 = vperm.xlu0 %424, %v200
        %v426 = vpop.permute.xlu0 %425
        %vm427 = vcmp.eq.s32.totalorder %v333, %v202
        %vm428 = vcmp.eq.s32.totalorder %v336, %v202
        %vm429 = vcmp.eq.s32.totalorder %v339, %v202
        %vm430 = vcmp.eq.s32.totalorder %v342, %v202
        %vm431 = vcmp.eq.s32.totalorder %v345, %v202
        %vm432 = vcmp.eq.s32.totalorder %v348, %v202
        %vm433 = vcmp.eq.s32.totalorder %v351, %v202
        %vm434 = vcmp.eq.s32.totalorder %v354, %v202
        %vm435 = vcmp.eq.s32.totalorder %v357, %v202
        %vm436 = vcmp.eq.s32.totalorder %v360, %v202
        %vm437 = vcmp.eq.s32.totalorder %v363, %v202
        %vm438 = vcmp.eq.s32.totalorder %v366, %v202
        %vm439 = vcmp.eq.s32.totalorder %v369, %v202
        %vm440 = vcmp.eq.s32.totalorder %v372, %v202
        %vm441 = vcmp.eq.s32.totalorder %v375, %v202
        %vm442 = vcmp.eq.s32.totalorder %v378, %v202
        %vm443 = vcmp.eq.s32.totalorder %v381, %v202
        %vm444 = vcmp.eq.s32.totalorder %v384, %v202
        %vm445 = vcmp.eq.s32.totalorder %v387, %v202
        %vm446 = vcmp.eq.s32.totalorder %v390, %v202
        %vm447 = vcmp.eq.s32.totalorder %v393, %v202
        %vm448 = vcmp.eq.s32.totalorder %v396, %v202
        %vm449 = vcmp.eq.s32.totalorder %v399, %v202
        %vm450 = vcmp.eq.s32.totalorder %v402, %v202
        %vm451 = vcmp.eq.s32.totalorder %v405, %v202
        %vm452 = vcmp.eq.s32.totalorder %v408, %v202
        %vm453 = vcmp.eq.s32.totalorder %v411, %v202
        %vm454 = vcmp.eq.s32.totalorder %v414, %v202
        %vm455 = vcmp.eq.s32.totalorder %v417, %v202
        %vm456 = vcmp.eq.s32.totalorder %v420, %v202
        %vm457 = vcmp.eq.s32.totalorder %v423, %v202
        %vm458 = vcmp.eq.s32.totalorder %v426, %v202
        %vm459 = vmor %vm299, %vm427
        %vm460 = vmor %vm300, %vm428
        %vm461 = vmor %vm301, %vm429
        %vm462 = vmor %vm302, %vm430
        %vm463 = vmor %vm303, %vm431
        %vm464 = vmor %vm304, %vm432
        %vm465 = vmor %vm305, %vm433
        %vm466 = vmor %vm306, %vm434
        %vm467 = vmor %vm307, %vm435
        %vm468 = vmor %vm308, %vm436
        %vm469 = vmor %vm309, %vm437
        %vm470 = vmor %vm310, %vm438
        %vm471 = vmor %vm311, %vm439
        %vm472 = vmor %vm312, %vm440
        %vm473 = vmor %vm313, %vm441
        %vm474 = vmor %vm314, %vm442
        %vm475 = vmor %vm315, %vm443
        %vm476 = vmor %vm316, %vm444
        %vm477 = vmor %vm317, %vm445
        %vm478 = vmor %vm318, %vm446
        %vm479 = vmor %vm319, %vm447
        %vm480 = vmor %vm320, %vm448
        %vm481 = vmor %vm321, %vm449
        %vm482 = vmor %vm322, %vm450
        %vm483 = vmor %vm323, %vm451
        %vm484 = vmor %vm324, %vm452
        %vm485 = vmor %vm325, %vm453
        %vm486 = vmor %vm326, %vm454
        %vm487 = vmor %vm327, %vm455
        %vm488 = vmor %vm328, %vm456
        %vm489 = vmor %vm329, %vm457
        %vm490 = vmor %vm330, %vm458
        %491 = vset.pattern.permute.xlu0 2
        %492 = vperm.xlu0 %491, %v169
        %v493 = vpop.permute.xlu0 %492
        %494 = vset.pattern.permute.xlu0 2
        %495 = vperm.xlu0 %494, %v170
        %v496 = vpop.permute.xlu0 %495
        %497 = vset.pattern.permute.xlu0 2
        %498 = vperm.xlu0 %497, %v171
        %v499 = vpop.permute.xlu0 %498
        %500 = vset.pattern.permute.xlu0 2
        %501 = vperm.xlu0 %500, %v172
        %v502 = vpop.permute.xlu0 %501
        %503 = vset.pattern.permute.xlu0 2
        %504 = vperm.xlu0 %503, %v173
        %v505 = vpop.permute.xlu0 %504
        %506 = vset.pattern.permute.xlu0 2
        %507 = vperm.xlu0 %506, %v174
        %v508 = vpop.permute.xlu0 %507
        %509 = vset.pattern.permute.xlu0 2
        %510 = vperm.xlu0 %509, %v175
        %v511 = vpop.permute.xlu0 %510
        %512 = vset.pattern.permute.xlu0 2
        %513 = vperm.xlu0 %512, %v176
        %v514 = vpop.permute.xlu0 %513
        %515 = vset.pattern.permute.xlu0 2
        %516 = vperm.xlu0 %515, %v177
        %v517 = vpop.permute.xlu0 %516
        %518 = vset.pattern.permute.xlu0 2
        %519 = vperm.xlu0 %518, %v178
        %v520 = vpop.permute.xlu0 %519
        %521 = vset.pattern.permute.xlu0 2
        %522 = vperm.xlu0 %521, %v179
        %v523 = vpop.permute.xlu0 %522
        %524 = vset.pattern.permute.xlu0 2
        %525 = vperm.xlu0 %524, %v180
        %v526 = vpop.permute.xlu0 %525
        %527 = vset.pattern.permute.xlu0 2
        %528 = vperm.xlu0 %527, %v181
        %v529 = vpop.permute.xlu0 %528
        %530 = vset.pattern.permute.xlu0 2
        %531 = vperm.xlu0 %530, %v182
        %v532 = vpop.permute.xlu0 %531
        %533 = vset.pattern.permute.xlu0 2
        %534 = vperm.xlu0 %533, %v183
        %v535 = vpop.permute.xlu0 %534
        %536 = vset.pattern.permute.xlu0 2
        %537 = vperm.xlu0 %536, %v184
        %v538 = vpop.permute.xlu0 %537
        %539 = vset.pattern.permute.xlu0 2
        %540 = vperm.xlu0 %539, %v185
        %v541 = vpop.permute.xlu0 %540
        %542 = vset.pattern.permute.xlu0 2
        %543 = vperm.xlu0 %542, %v186
        %v544 = vpop.permute.xlu0 %543
        %545 = vset.pattern.permute.xlu0 2
        %546 = vperm.xlu0 %545, %v187
        %v547 = vpop.permute.xlu0 %546
        %548 = vset.pattern.permute.xlu0 2
        %549 = vperm.xlu0 %548, %v188
        %v550 = vpop.permute.xlu0 %549
        %551 = vset.pattern.permute.xlu0 2
        %552 = vperm.xlu0 %551, %v189
        %v553 = vpop.permute.xlu0 %552
        %554 = vset.pattern.permute.xlu0 2
        %555 = vperm.xlu0 %554, %v190
        %v556 = vpop.permute.xlu0 %555
        %557 = vset.pattern.permute.xlu0 2
        %558 = vperm.xlu0 %557, %v191
        %v559 = vpop.permute.xlu0 %558
        %560 = vset.pattern.permute.xlu0 2
        %561 = vperm.xlu0 %560, %v192
        %v562 = vpop.permute.xlu0 %561
        %563 = vset.pattern.permute.xlu0 2
        %564 = vperm.xlu0 %563, %v193
        %v565 = vpop.permute.xlu0 %564
        %566 = vset.pattern.permute.xlu0 2
        %567 = vperm.xlu0 %566, %v194
        %v568 = vpop.permute.xlu0 %567
        %569 = vset.pattern.permute.xlu0 2
        %570 = vperm.xlu0 %569, %v195
        %v571 = vpop.permute.xlu0 %570
        %572 = vset.pattern.permute.xlu0 2
        %573 = vperm.xlu0 %572, %v196
        %v574 = vpop.permute.xlu0 %573
        %575 = vset.pattern.permute.xlu0 2
        %576 = vperm.xlu0 %575, %v197
        %v577 = vpop.permute.xlu0 %576
        %578 = vset.pattern.permute.xlu0 2
        %579 = vperm.xlu0 %578, %v198
        %v580 = vpop.permute.xlu0 %579
        %581 = vset.pattern.permute.xlu0 2
        %582 = vperm.xlu0 %581, %v199
        %v583 = vpop.permute.xlu0 %582
        %584 = vset.pattern.permute.xlu0 2
        %585 = vperm.xlu0 %584, %v200
        %v586 = vpop.permute.xlu0 %585
        %vm587 = vcmp.eq.s32.totalorder %v493, %v202
        %vm588 = vcmp.eq.s32.totalorder %v496, %v202
        %vm589 = vcmp.eq.s32.totalorder %v499, %v202
        %vm590 = vcmp.eq.s32.totalorder %v502, %v202
        %vm591 = vcmp.eq.s32.totalorder %v505, %v202
        %vm592 = vcmp.eq.s32.totalorder %v508, %v202
        %vm593 = vcmp.eq.s32.totalorder %v511, %v202
        %vm594 = vcmp.eq.s32.totalorder %v514, %v202
        %vm595 = vcmp.eq.s32.totalorder %v517, %v202
        %vm596 = vcmp.eq.s32.totalorder %v520, %v202
        %vm597 = vcmp.eq.s32.totalorder %v523, %v202
        %vm598 = vcmp.eq.s32.totalorder %v526, %v202
        %vm599 = vcmp.eq.s32.totalorder %v529, %v202
        %vm600 = vcmp.eq.s32.totalorder %v532, %v202
        %vm601 = vcmp.eq.s32.totalorder %v535, %v202
        %vm602 = vcmp.eq.s32.totalorder %v538, %v202
        %vm603 = vcmp.eq.s32.totalorder %v541, %v202
        %vm604 = vcmp.eq.s32.totalorder %v544, %v202
        %vm605 = vcmp.eq.s32.totalorder %v547, %v202
        %vm606 = vcmp.eq.s32.totalorder %v550, %v202
        %vm607 = vcmp.eq.s32.totalorder %v553, %v202
        %vm608 = vcmp.eq.s32.totalorder %v556, %v202
        %vm609 = vcmp.eq.s32.totalorder %v559, %v202
        %vm610 = vcmp.eq.s32.totalorder %v562, %v202
        %vm611 = vcmp.eq.s32.totalorder %v565, %v202
        %vm612 = vcmp.eq.s32.totalorder %v568, %v202
        %vm613 = vcmp.eq.s32.totalorder %v571, %v202
        %vm614 = vcmp.eq.s32.totalorder %v574, %v202
        %vm615 = vcmp.eq.s32.totalorder %v577, %v202
        %vm616 = vcmp.eq.s32.totalorder %v580, %v202
        %vm617 = vcmp.eq.s32.totalorder %v583, %v202
        %vm618 = vcmp.eq.s32.totalorder %v586, %v202
        %vm619 = vmor %vm459, %vm587
        %vm620 = vmor %vm460, %vm588
        %vm621 = vmor %vm461, %vm589
        %vm622 = vmor %vm462, %vm590
        %vm623 = vmor %vm463, %vm591
        %vm624 = vmor %vm464, %vm592
        %vm625 = vmor %vm465, %vm593
        %vm626 = vmor %vm466, %vm594
        %vm627 = vmor %vm467, %vm595
        %vm628 = vmor %vm468, %vm596
        %vm629 = vmor %vm469, %vm597
        %vm630 = vmor %vm470, %vm598
        %vm631 = vmor %vm471, %vm599
        %vm632 = vmor %vm472, %vm600
        %vm633 = vmor %vm473, %vm601
        %vm634 = vmor %vm474, %vm602
        %vm635 = vmor %vm475, %vm603
        %vm636 = vmor %vm476, %vm604
        %vm637 = vmor %vm477, %vm605
        %vm638 = vmor %vm478, %vm606
        %vm639 = vmor %vm479, %vm607
        %vm640 = vmor %vm480, %vm608
        %vm641 = vmor %vm481, %vm609
        %vm642 = vmor %vm482, %vm610
        %vm643 = vmor %vm483, %vm611
        %vm644 = vmor %vm484, %vm612
        %vm645 = vmor %vm485, %vm613
        %vm646 = vmor %vm486, %vm614
        %vm647 = vmor %vm487, %vm615
        %vm648 = vmor %vm488, %vm616
        %vm649 = vmor %vm489, %vm617
        %vm650 = vmor %vm490, %vm618
        %651 = vset.pattern.permute.xlu0 3
        %652 = vperm.xlu0 %651, %v169
        %v653 = vpop.permute.xlu0 %652
        %654 = vset.pattern.permute.xlu0 3
        %655 = vperm.xlu0 %654, %v170
        %v656 = vpop.permute.xlu0 %655
        %657 = vset.pattern.permute.xlu0 3
        %658 = vperm.xlu0 %657, %v171
        %v659 = vpop.permute.xlu0 %658
        %660 = vset.pattern.permute.xlu0 3
        %661 = vperm.xlu0 %660, %v172
        %v662 = vpop.permute.xlu0 %661
        %663 = vset.pattern.permute.xlu0 3
        %664 = vperm.xlu0 %663, %v173
        %v665 = vpop.permute.xlu0 %664
        %666 = vset.pattern.permute.xlu0 3
        %667 = vperm.xlu0 %666, %v174
        %v668 = vpop.permute.xlu0 %667
        %669 = vset.pattern.permute.xlu0 3
        %670 = vperm.xlu0 %669, %v175
        %v671 = vpop.permute.xlu0 %670
        %672 = vset.pattern.permute.xlu0 3
        %673 = vperm.xlu0 %672, %v176
        %v674 = vpop.permute.xlu0 %673
        %675 = vset.pattern.permute.xlu0 3
        %676 = vperm.xlu0 %675, %v177
        %v677 = vpop.permute.xlu0 %676
        %678 = vset.pattern.permute.xlu0 3
        %679 = vperm.xlu0 %678, %v178
        %v680 = vpop.permute.xlu0 %679
        %681 = vset.pattern.permute.xlu0 3
        %682 = vperm.xlu0 %681, %v179
        %v683 = vpop.permute.xlu0 %682
        %684 = vset.pattern.permute.xlu0 3
        %685 = vperm.xlu0 %684, %v180
        %v686 = vpop.permute.xlu0 %685
        %687 = vset.pattern.permute.xlu0 3
        %688 = vperm.xlu0 %687, %v181
        %v689 = vpop.permute.xlu0 %688
        %690 = vset.pattern.permute.xlu0 3
        %691 = vperm.xlu0 %690, %v182
        %v692 = vpop.permute.xlu0 %691
        %693 = vset.pattern.permute.xlu0 3
        %694 = vperm.xlu0 %693, %v183
        %v695 = vpop.permute.xlu0 %694
        %696 = vset.pattern.permute.xlu0 3
        %697 = vperm.xlu0 %696, %v184
        %v698 = vpop.permute.xlu0 %697
        %699 = vset.pattern.permute.xlu0 3
        %700 = vperm.xlu0 %699, %v185
        %v701 = vpop.permute.xlu0 %700
        %702 = vset.pattern.permute.xlu0 3
        %703 = vperm.xlu0 %702, %v186
        %v704 = vpop.permute.xlu0 %703
        %705 = vset.pattern.permute.xlu0 3
        %706 = vperm.xlu0 %705, %v187
        %v707 = vpop.permute.xlu0 %706
        %708 = vset.pattern.permute.xlu0 3
        %709 = vperm.xlu0 %708, %v188
        %v710 = vpop.permute.xlu0 %709
        %711 = vset.pattern.permute.xlu0 3
        %712 = vperm.xlu0 %711, %v189
        %v713 = vpop.permute.xlu0 %712
        %714 = vset.pattern.permute.xlu0 3
        %715 = vperm.xlu0 %714, %v190
        %v716 = vpop.permute.xlu0 %715
        %717 = vset.pattern.permute.xlu0 3
        %718 = vperm.xlu0 %717, %v191
        %v719 = vpop.permute.xlu0 %718
        %720 = vset.pattern.permute.xlu0 3
        %721 = vperm.xlu0 %720, %v192
        %v722 = vpop.permute.xlu0 %721
        %723 = vset.pattern.permute.xlu0 3
        %724 = vperm.xlu0 %723, %v193
        %v725 = vpop.permute.xlu0 %724
        %726 = vset.pattern.permute.xlu0 3
        %727 = vperm.xlu0 %726, %v194
        %v728 = vpop.permute.xlu0 %727
        %729 = vset.pattern.permute.xlu0 3
        %730 = vperm.xlu0 %729, %v195
        %v731 = vpop.permute.xlu0 %730
        %732 = vset.pattern.permute.xlu0 3
        %733 = vperm.xlu0 %732, %v196
        %v734 = vpop.permute.xlu0 %733
        %735 = vset.pattern.permute.xlu0 3
        %736 = vperm.xlu0 %735, %v197
        %v737 = vpop.permute.xlu0 %736
        %738 = vset.pattern.permute.xlu0 3
        %739 = vperm.xlu0 %738, %v198
        %v740 = vpop.permute.xlu0 %739
        %741 = vset.pattern.permute.xlu0 3
        %742 = vperm.xlu0 %741, %v199
        %v743 = vpop.permute.xlu0 %742
        %744 = vset.pattern.permute.xlu0 3
        %745 = vperm.xlu0 %744, %v200
        %v746 = vpop.permute.xlu0 %745
        %vm747 = vcmp.eq.s32.totalorder %v653, %v202
        %vm748 = vcmp.eq.s32.totalorder %v656, %v202
        %vm749 = vcmp.eq.s32.totalorder %v659, %v202
        %vm750 = vcmp.eq.s32.totalorder %v662, %v202
        %vm751 = vcmp.eq.s32.totalorder %v665, %v202
        %vm752 = vcmp.eq.s32.totalorder %v668, %v202
        %vm753 = vcmp.eq.s32.totalorder %v671, %v202
        %vm754 = vcmp.eq.s32.totalorder %v674, %v202
        %vm755 = vcmp.eq.s32.totalorder %v677, %v202
        %vm756 = vcmp.eq.s32.totalorder %v680, %v202
        %vm757 = vcmp.eq.s32.totalorder %v683, %v202
        %vm758 = vcmp.eq.s32.totalorder %v686, %v202
        %vm759 = vcmp.eq.s32.totalorder %v689, %v202
        %vm760 = vcmp.eq.s32.totalorder %v692, %v202
        %vm761 = vcmp.eq.s32.totalorder %v695, %v202
        %vm762 = vcmp.eq.s32.totalorder %v698, %v202
        %vm763 = vcmp.eq.s32.totalorder %v701, %v202
        %vm764 = vcmp.eq.s32.totalorder %v704, %v202
        %vm765 = vcmp.eq.s32.totalorder %v707, %v202
        %vm766 = vcmp.eq.s32.totalorder %v710, %v202
        %vm767 = vcmp.eq.s32.totalorder %v713, %v202
        %vm768 = vcmp.eq.s32.totalorder %v716, %v202
        %vm769 = vcmp.eq.s32.totalorder %v719, %v202
        %vm770 = vcmp.eq.s32.totalorder %v722, %v202
        %vm771 = vcmp.eq.s32.totalorder %v725, %v202
        %vm772 = vcmp.eq.s32.totalorder %v728, %v202
        %vm773 = vcmp.eq.s32.totalorder %v731, %v202
        %vm774 = vcmp.eq.s32.totalorder %v734, %v202
        %vm775 = vcmp.eq.s32.totalorder %v737, %v202
        %vm776 = vcmp.eq.s32.totalorder %v740, %v202
        %vm777 = vcmp.eq.s32.totalorder %v743, %v202
        %vm778 = vcmp.eq.s32.totalorder %v746, %v202
        %vm779 = vmor %vm619, %vm747
        %vm780 = vmor %vm620, %vm748
        %vm781 = vmor %vm621, %vm749
        %vm782 = vmor %vm622, %vm750
        %vm783 = vmor %vm623, %vm751
        %vm784 = vmor %vm624, %vm752
        %vm785 = vmor %vm625, %vm753
        %vm786 = vmor %vm626, %vm754
        %vm787 = vmor %vm627, %vm755
        %vm788 = vmor %vm628, %vm756
        %vm789 = vmor %vm629, %vm757
        %vm790 = vmor %vm630, %vm758
        %vm791 = vmor %vm631, %vm759
        %vm792 = vmor %vm632, %vm760
        %vm793 = vmor %vm633, %vm761
        %vm794 = vmor %vm634, %vm762
        %vm795 = vmor %vm635, %vm763
        %vm796 = vmor %vm636, %vm764
        %vm797 = vmor %vm637, %vm765
        %vm798 = vmor %vm638, %vm766
        %vm799 = vmor %vm639, %vm767
        %vm800 = vmor %vm640, %vm768
        %vm801 = vmor %vm641, %vm769
        %vm802 = vmor %vm642, %vm770
        %vm803 = vmor %vm643, %vm771
        %vm804 = vmor %vm644, %vm772
        %vm805 = vmor %vm645, %vm773
        %vm806 = vmor %vm646, %vm774
        %vm807 = vmor %vm647, %vm775
        %vm808 = vmor %vm648, %vm776
        %vm809 = vmor %vm649, %vm777
        %vm810 = vmor %vm650, %vm778
        %v811 = vsel %vm779, 1, 0
        %v812 = vsel %vm780, 1, 0
        %v813 = vsel %vm781, 1, 0
        %v814 = vsel %vm782, 1, 0
        %v815 = vsel %vm783, 1, 0
        %v816 = vsel %vm784, 1, 0
        %v817 = vsel %vm785, 1, 0
        %v818 = vsel %vm786, 1, 0
        %v819 = vsel %vm787, 1, 0
        %v820 = vsel %vm788, 1, 0
        %v821 = vsel %vm789, 1, 0
        %v822 = vsel %vm790, 1, 0
        %v823 = vsel %vm791, 1, 0
        %v824 = vsel %vm792, 1, 0
        %v825 = vsel %vm793, 1, 0
        %v826 = vsel %vm794, 1, 0
        %v827 = vsel %vm795, 1, 0
        %v828 = vsel %vm796, 1, 0
        %v829 = vsel %vm797, 1, 0
        %v830 = vsel %vm798, 1, 0
        %v831 = vsel %vm799, 1, 0
        %v832 = vsel %vm800, 1, 0
        %v833 = vsel %vm801, 1, 0
        %v834 = vsel %vm802, 1, 0
        %v835 = vsel %vm803, 1, 0
        %v836 = vsel %vm804, 1, 0
        %v837 = vsel %vm805, 1, 0
        %v838 = vsel %vm806, 1, 0
        %v839 = vsel %vm807, 1, 0
        %v840 = vsel %vm808, 1, 0
        %v841 = vsel %vm809, 1, 0
        %v842 = vsel %vm810, 1, 0
        %v843 = vcvt.s32.f32 %v811
        %v844 = vcvt.s32.f32 %v812
        %v845 = vcvt.s32.f32 %v813
        %v846 = vcvt.s32.f32 %v814
        %v847 = vcvt.s32.f32 %v815
        %v848 = vcvt.s32.f32 %v816
        %v849 = vcvt.s32.f32 %v817
        %v850 = vcvt.s32.f32 %v818
        %v851 = vcvt.s32.f32 %v819
        %v852 = vcvt.s32.f32 %v820
        %v853 = vcvt.s32.f32 %v821
        %v854 = vcvt.s32.f32 %v822
        %v855 = vcvt.s32.f32 %v823
        %v856 = vcvt.s32.f32 %v824
        %v857 = vcvt.s32.f32 %v825
        %v858 = vcvt.s32.f32 %v826
        %v859 = vcvt.s32.f32 %v827
        %v860 = vcvt.s32.f32 %v828
        %v861 = vcvt.s32.f32 %v829
        %v862 = vcvt.s32.f32 %v830
        %v863 = vcvt.s32.f32 %v831
        %v864 = vcvt.s32.f32 %v832
        %v865 = vcvt.s32.f32 %v833
        %v866 = vcvt.s32.f32 %v834
        %v867 = vcvt.s32.f32 %v835
        %v868 = vcvt.s32.f32 %v836
        %v869 = vcvt.s32.f32 %v837
        %v870 = vcvt.s32.f32 %v838
        %v871 = vcvt.s32.f32 %v839
        %v872 = vcvt.s32.f32 %v840
        %v873 = vcvt.s32.f32 %v841
        %v874 = vcvt.s32.f32 %v842
        %v875 = vld [vmem:[%s1] sm:$0xff]
        %v876 = vld [vmem:[%s1 + $0x8] sm:$0xff]
        %v877 = vld [vmem:[%s1 + $0x10] sm:$0xff]
        %v878 = vld [vmem:[%s1 + $0x18] sm:$0xff]
        %vm879 = vcmask 261120
        %v881 = vsel %vm879, %v843, 0
        %v884 = vsel %vm879, %v844, 0
        %v887 = vsel %vm879, %v845, 0
        %v890 = vsel %vm879, %v846, 0
        %v893 = vsel %vm879, %v847, 0
        %v896 = vsel %vm879, %v848, 0
        %v899 = vsel %vm879, %v849, 0
        %v902 = vsel %vm879, %v850, 0
        %v905 = vsel %vm879, %v851, 0
        %v908 = vsel %vm879, %v852, 0
        %v911 = vsel %vm879, %v853, 0
        %v914 = vsel %vm879, %v854, 0
        %v917 = vsel %vm879, %v855, 0
        %v920 = vsel %vm879, %v856, 0
        %v923 = vsel %vm879, %v857, 0
        %v926 = vsel %vm879, %v858, 0
        %v929 = vsel %vm879, %v859, 0
        %v932 = vsel %vm879, %v860, 0
        %v935 = vsel %vm879, %v861, 0
        %v938 = vsel %vm879, %v862, 0
        %v941 = vsel %vm879, %v863, 0
        %v944 = vsel %vm879, %v864, 0
        %v947 = vsel %vm879, %v865, 0
        %v950 = vsel %vm879, %v866, 0
        %v953 = vsel %vm879, %v867, 0
        %v956 = vsel %vm879, %v868, 0
        %v959 = vsel %vm879, %v869, 0
        %v962 = vsel %vm879, %v870, 0
        %v965 = vsel %vm879, %v871, 0
        %v968 = vsel %vm879, %v872, 0
        %v971 = vsel %vm879, %v873, 0
        %v974 = vsel %vm879, %v874, 0
        %976 = vmatprep.subr.mxu0 0.0
        %977 = vmatpush1.msra.mxu0 %v875
        %978 = vmatprep.subr.mxu0 0.0
        %979 = vmatpush1.msra.mxu0 %v876
        %980 = vmatprep.subr.mxu0 0.0
        %981 = vmatpush1.msra.mxu0 %v877
        %982 = vmatprep.subr.mxu0 0.0
        %983 = vmatpush1.msra.mxu0 %v878
        %984 = vmatprep.subr.mxu0 0.0
        %985 = vmatpush1.msra.mxu0 0.0
        %986 = vmatprep.subr.mxu0 0.0
        %987 = vmatpush1.msra.mxu0 0.0
        %988 = vmatprep.subr.mxu0 0.0
        %989 = vmatpush1.msra.mxu0 0.0
        %990 = vmatprep.subr.mxu0 0.0
        %991 = vmatpush1.msra.mxu0 0.0
        %992 = vmatprep.subr.mxu0 0.0
        %993 = vmatpush1.msra.mxu0 0.0
        %994 = vmatprep.subr.mxu0 0.0
        %995 = vmatpush1.msra.mxu0 0.0
        %996 = vmatprep.subr.mxu0 0.0
        %997 = vmatpush1.msra.mxu0 0.0
        %998 = vmatprep.subr.mxu0 0.0
        %999 = vmatpush1.msra.mxu0 0.0
        %1000 = vmatprep.subr.mxu0 0.0
        %1001 = vmatpush1.msra.mxu0 0.0
        %1002 = vmatprep.subr.mxu0 0.0
        %1003 = vmatpush1.msra.mxu0 0.0
        %1004 = vmatprep.subr.mxu0 0.0
        %1005 = vmatpush1.msra.mxu0 0.0
        %1006 = vmatprep.subr.mxu0 0.0
        %1007 = vmatpush1.msra.mxu0 0.0
        %1008 = vmatprep.subr.mxu0 0.0
        %1009 = vmatpush1.msra.mxu0 0.0
        %1010 = vmatprep.subr.mxu0 0.0
        %1011 = vmatpush1.msra.mxu0 0.0
        %1012 = vmatprep.subr.mxu0 0.0
        %1013 = vmatpush1.msra.mxu0 0.0
        %1014 = vmatprep.subr.mxu0 0.0
        %1015 = vmatpush1.msra.mxu0 0.0
        %1016 = vmatprep.subr.mxu0 0.0
        %1017 = vmatpush1.msra.mxu0 0.0
        %1018 = vmatprep.subr.mxu0 0.0
        %1019 = vmatpush1.msra.mxu0 0.0
        %1020 = vmatprep.subr.mxu0 0.0
        %1021 = vmatpush1.msra.mxu0 0.0
        %1022 = vmatprep.subr.mxu0 0.0
        %1023 = vmatpush1.msra.mxu0 0.0
        %1024 = vmatprep.subr.mxu0 0.0
        %1025 = vmatpush1.msra.mxu0 0.0
        %1026 = vmatprep.subr.mxu0 0.0
        %1027 = vmatpush1.msra.mxu0 0.0
        %1028 = vmatprep.subr.mxu0 0.0
        %1029 = vmatpush1.msra.mxu0 0.0
        %1030 = vmatprep.subr.mxu0 0.0
        %1031 = vmatpush1.msra.mxu0 0.0
        %1032 = vmatprep.subr.mxu0 0.0
        %1033 = vmatpush1.msra.mxu0 0.0
        %1034 = vmatprep.subr.mxu0 0.0
        %1035 = vmatpush1.msra.mxu0 0.0
        %1036 = vmatprep.subr.mxu0 0.0
        %1037 = vmatpush1.msra.mxu0 0.0
        %1038 = vmatprep.subr.mxu0 0.0
        %1039 = vmatpush1.msra.mxu0 0.0
        %1040 = vmatprep.mubr.f32.mxu0 0.0
        %1041 = vmatmul.mubr.f32.gmra.mrb[0].mxu0 %v881
        %v1042 = vpop.f32.mrb[0].mxu0
        %v1043 = vadd.f32 0.0, %v1042
        %v1044 = vpop.f32.mrb[0].mxu0
        %1045 = vmatprep.mubr.f32.mxu0 0.0
        %1046 = vmatmul.mubr.f32.gmra.mrb[0].mxu0 %v884
        %v1047 = vpop.f32.mrb[0].mxu0
        %v1048 = vadd.f32 0.0, %v1047
        %v1049 = vpop.f32.mrb[0].mxu0
        %1050 = vmatprep.mubr.f32.mxu0 0.0
        %1051 = vmatmul.mubr.f32.gmra.mrb[0].mxu0 %v887
        %v1052 = vpop.f32.mrb[0].mxu0
        %v1053 = vadd.f32 0.0, %v1052
        %v1054 = vpop.f32.mrb[0].mxu0
        %1055 = vmatprep.mubr.f32.mxu0 0.0
        %1056 = vmatmul.mubr.f32.gmra.mrb[0].mxu0 %v890
        %v1057 = vpop.f32.mrb[0].mxu0
        %v1058 = vadd.f32 0.0, %v1057
        %v1059 = vpop.f32.mrb[0].mxu0
        %1060 = vmatprep.mubr.f32.mxu0 0.0
        %1061 = vmatmul.mubr.f32.gmra.mrb[0].mxu0 %v893
        %v1062 = vpop.f32.mrb[0].mxu0
        %v1063 = vadd.f32 0.0, %v1062
        %v1064 = vpop.f32.mrb[0].mxu0
        %1065 = vmatprep.mubr.f32.mxu0 0.0
        %1066 = vmatmul.mubr.f32.gmra.mrb[0].mxu0 %v896
        %v1067 = vpop.f32.mrb[0].mxu0
        %v1068 = vadd.f32 0.0, %v1067
        %v1069 = vpop.f32.mrb[0].mxu0
        %1070 = vmatprep.mubr.f32.mxu0 0.0
        %1071 = vmatmul.mubr.f32.gmra.mrb[0].mxu0 %v899
        %v1072 = vpop.f32.mrb[0].mxu0
        %v1073 = vadd.f32 0.0, %v1072
        %v1074 = vpop.f32.mrb[0].mxu0
        %1075 = vmatprep.mubr.f32.mxu0 0.0
        %1076 = vmatmul.mubr.f32.gmra.mrb[0].mxu0 %v902
        %v1077 = vpop.f32.mrb[0].mxu0
        %v1078 = vadd.f32 0.0, %v1077
        %v1079 = vpop.f32.mrb[0].mxu0
        %1080 = vmatprep.mubr.f32.mxu0 0.0
        %1081 = vmatmul.mubr.f32.gmra.mrb[0].mxu0 %v905
        %v1082 = vpop.f32.mrb[0].mxu0
        %v1083 = vadd.f32 0.0, %v1082
        %v1084 = vpop.f32.mrb[0].mxu0
        %1085 = vmatprep.mubr.f32.mxu0 0.0
        %1086 = vmatmul.mubr.f32.gmra.mrb[0].mxu0 %v908
        %v1087 = vpop.f32.mrb[0].mxu0
        %v1088 = vadd.f32 0.0, %v1087
        %v1089 = vpop.f32.mrb[0].mxu0
        %1090 = vmatprep.mubr.f32.mxu0 0.0
        %1091 = vmatmul.mubr.f32.gmra.mrb[0].mxu0 %v911
        %v1092 = vpop.f32.mrb[0].mxu0
        %v1093 = vadd.f32 0.0, %v1092
        %v1094 = vpop.f32.mrb[0].mxu0
        %1095 = vmatprep.mubr.f32.mxu0 0.0
        %1096 = vmatmul.mubr.f32.gmra.mrb[0].mxu0 %v914
        %v1097 = vpop.f32.mrb[0].mxu0
        %v1098 = vadd.f32 0.0, %v1097
        %v1099 = vpop.f32.mrb[0].mxu0
        %1100 = vmatprep.mubr.f32.mxu0 0.0
        %1101 = vmatmul.mubr.f32.gmra.mrb[0].mxu0 %v917
        %v1102 = vpop.f32.mrb[0].mxu0
        %v1103 = vadd.f32 0.0, %v1102
        %v1104 = vpop.f32.mrb[0].mxu0
        %1105 = vmatprep.mubr.f32.mxu0 0.0
        %1106 = vmatmul.mubr.f32.gmra.mrb[0].mxu0 %v920
        %v1107 = vpop.f32.mrb[0].mxu0
        %v1108 = vadd.f32 0.0, %v1107
        %v1109 = vpop.f32.mrb[0].mxu0
        %1110 = vmatprep.mubr.f32.mxu0 0.0
        %1111 = vmatmul.mubr.f32.gmra.mrb[0].mxu0 %v923
        %v1112 = vpop.f32.mrb[0].mxu0
        %v1113 = vadd.f32 0.0, %v1112
        %v1114 = vpop.f32.mrb[0].mxu0
        %1115 = vmatprep.mubr.f32.mxu0 0.0
        %1116 = vmatmul.mubr.f32.gmra.mrb[0].mxu0 %v926
        %v1117 = vpop.f32.mrb[0].mxu0
        %v1118 = vadd.f32 0.0, %v1117
        %v1119 = vpop.f32.mrb[0].mxu0
        %1120 = vmatprep.mubr.f32.mxu0 0.0
        %1121 = vmatmul.mubr.f32.gmra.mrb[0].mxu0 %v929
        %v1122 = vpop.f32.mrb[0].mxu0
        %v1123 = vadd.f32 0.0, %v1122
        %v1124 = vpop.f32.mrb[0].mxu0
        %1125 = vmatprep.mubr.f32.mxu0 0.0
        %1126 = vmatmul.mubr.f32.gmra.mrb[0].mxu0 %v932
        %v1127 = vpop.f32.mrb[0].mxu0
        %v1128 = vadd.f32 0.0, %v1127
        %v1129 = vpop.f32.mrb[0].mxu0
        %1130 = vmatprep.mubr.f32.mxu0 0.0
        %1131 = vmatmul.mubr.f32.gmra.mrb[0].mxu0 %v935
        %v1132 = vpop.f32.mrb[0].mxu0
        %v1133 = vadd.f32 0.0, %v1132
        %v1134 = vpop.f32.mrb[0].mxu0
        %1135 = vmatprep.mubr.f32.mxu0 0.0
        %1136 = vmatmul.mubr.f32.gmra.mrb[0].mxu0 %v938
        %v1137 = vpop.f32.mrb[0].mxu0
        %v1138 = vadd.f32 0.0, %v1137
        %v1139 = vpop.f32.mrb[0].mxu0
        %1140 = vmatprep.mubr.f32.mxu0 0.0
        %1141 = vmatmul.mubr.f32.gmra.mrb[0].mxu0 %v941
        %v1142 = vpop.f32.mrb[0].mxu0
        %v1143 = vadd.f32 0.0, %v1142
        %v1144 = vpop.f32.mrb[0].mxu0
        %1145 = vmatprep.mubr.f32.mxu0 0.0
        %1146 = vmatmul.mubr.f32.gmra.mrb[0].mxu0 %v944
        %v1147 = vpop.f32.mrb[0].mxu0
        %v1148 = vadd.f32 0.0, %v1147
        %v1149 = vpop.f32.mrb[0].mxu0
        %1150 = vmatprep.mubr.f32.mxu0 0.0
        %1151 = vmatmul.mubr.f32.gmra.mrb[0].mxu0 %v947
        %v1152 = vpop.f32.mrb[0].mxu0
        %v1153 = vadd.f32 0.0, %v1152
        %v1154 = vpop.f32.mrb[0].mxu0
        %1155 = vmatprep.mubr.f32.mxu0 0.0
        %1156 = vmatmul.mubr.f32.gmra.mrb[0].mxu0 %v950
        %v1157 = vpop.f32.mrb[0].mxu0
        %v1158 = vadd.f32 0.0, %v1157
        %v1159 = vpop.f32.mrb[0].mxu0
        %1160 = vmatprep.mubr.f32.mxu0 0.0
        %1161 = vmatmul.mubr.f32.gmra.mrb[0].mxu0 %v953
        %v1162 = vpop.f32.mrb[0].mxu0
        %v1163 = vadd.f32 0.0, %v1162
        %v1164 = vpop.f32.mrb[0].mxu0
        %1165 = vmatprep.mubr.f32.mxu0 0.0
        %1166 = vmatmul.mubr.f32.gmra.mrb[0].mxu0 %v956
        %v1167 = vpop.f32.mrb[0].mxu0
        %v1168 = vadd.f32 0.0, %v1167
        %v1169 = vpop.f32.mrb[0].mxu0
        %1170 = vmatprep.mubr.f32.mxu0 0.0
        %1171 = vmatmul.mubr.f32.gmra.mrb[0].mxu0 %v959
        %v1172 = vpop.f32.mrb[0].mxu0
        %v1173 = vadd.f32 0.0, %v1172
        %v1174 = vpop.f32.mrb[0].mxu0
        %1175 = vmatprep.mubr.f32.mxu0 0.0
        %1176 = vmatmul.mubr.f32.gmra.mrb[0].mxu0 %v962
        %v1177 = vpop.f32.mrb[0].mxu0
        %v1178 = vadd.f32 0.0, %v1177
        %v1179 = vpop.f32.mrb[0].mxu0
        %1180 = vmatprep.mubr.f32.mxu0 0.0
        %1181 = vmatmul.mubr.f32.gmra.mrb[0].mxu0 %v965
        %v1182 = vpop.f32.mrb[0].mxu0
        %v1183 = vadd.f32 0.0, %v1182
        %v1184 = vpop.f32.mrb[0].mxu0
        %1185 = vmatprep.mubr.f32.mxu0 0.0
        %1186 = vmatmul.mubr.f32.gmra.mrb[0].mxu0 %v968
        %v1187 = vpop.f32.mrb[0].mxu0
        %v1188 = vadd.f32 0.0, %v1187
        %v1189 = vpop.f32.mrb[0].mxu0
        %1190 = vmatprep.mubr.f32.mxu0 0.0
        %1191 = vmatmul.mubr.f32.gmra.mrb[0].mxu0 %v971
        %v1192 = vpop.f32.mrb[0].mxu0
        %v1193 = vadd.f32 0.0, %v1192
        %v1194 = vpop.f32.mrb[0].mxu0
        %1195 = vmatprep.mubr.f32.mxu0 0.0
        %1196 = vmatmul.mubr.f32.gmra.mrb[0].mxu0 %v974
        %v1197 = vpop.f32.mrb[0].mxu0
        %v1198 = vadd.f32 0.0, %v1197
        %v1199 = vpop.f32.mrb[0].mxu0
        %1200 = vdwg.mxu0
        %1201 = vst [vmem:[%s149] sm:$0xff] %v1043
        %1202 = vst [vmem:[%s149 + $0x8] sm:$0xff] %v1048
        %1203 = vst [vmem:[%s149 + $0x10] sm:$0xff] %v1053
        %1204 = vst [vmem:[%s149 + $0x18] sm:$0xff] %v1058
        %1205 = vst [vmem:[%s149 + $0x20] sm:$0xff] %v1063
        %1206 = vst [vmem:[%s149 + $0x28] sm:$0xff] %v1068
        %1207 = vst [vmem:[%s149 + $0x30] sm:$0xff] %v1073
        %1208 = vst [vmem:[%s149 + $0x38] sm:$0xff] %v1078
        %1209 = vst [vmem:[%s149 + $0x40] sm:$0xff] %v1083
        %1210 = vst [vmem:[%s149 + $0x48] sm:$0xff] %v1088
        %1211 = vst [vmem:[%s149 + $0x50] sm:$0xff] %v1093
        %1212 = vst [vmem:[%s149 + $0x58] sm:$0xff] %v1098
        %1213 = vst [vmem:[%s149 + $0x60] sm:$0xff] %v1103
        %1214 = vst [vmem:[%s149 + $0x68] sm:$0xff] %v1108
        %1215 = vst [vmem:[%s149 + $0x70] sm:$0xff] %v1113
        %1216 = vst [vmem:[%s149 + $0x78] sm:$0xff] %v1118
        %1217 = vst [vmem:[%s149 + $0x80] sm:$0xff] %v1123
        %1218 = vst [vmem:[%s149 + $0x88] sm:$0xff] %v1128
        %1219 = vst [vmem:[%s149 + $0x90] sm:$0xff] %v1133
        %1220 = vst [vmem:[%s149 + $0x98] sm:$0xff] %v1138
        %1221 = vst [vmem:[%s149 + $0xa0] sm:$0xff] %v1143
        %1222 = vst [vmem:[%s149 + $0xa8] sm:$0xff] %v1148
        %1223 = vst [vmem:[%s149 + $0xb0] sm:$0xff] %v1153
        %1224 = vst [vmem:[%s149 + $0xb8] sm:$0xff] %v1158
        %1225 = vst [vmem:[%s149 + $0xc0] sm:$0xff] %v1163
        %1226 = vst [vmem:[%s149 + $0xc8] sm:$0xff] %v1168
        %1227 = vst [vmem:[%s149 + $0xd0] sm:$0xff] %v1173
        %1228 = vst [vmem:[%s149 + $0xd8] sm:$0xff] %v1178
        %1229 = vst [vmem:[%s149 + $0xe0] sm:$0xff] %v1183
        %1230 = vst [vmem:[%s149 + $0xe8] sm:$0xff] %v1188
        %1231 = vst [vmem:[%s149 + $0xf0] sm:$0xff] %v1193
        %1232 = vst [vmem:[%s149 + $0xf8] sm:$0xff] %v1198
        %s1233 = sand.u32 %s71, 1
        %s1234 = scalar_lea.sflag [#allocation3], %s1233
        %s1235 = sand.u32 %s71, 1
        %s1236 = smul.addr %s1235, 256
        %s1237 = scalar_lea.vmem [#allocation2], %s1236
        // Predicated region
        $region29: #{tpu_custom_call.1} parent=27 // pred_check
          %p1238 = pneg %p81
        $region30: #{tpu_custom_call.1} parent=27 // pred_check_branch
          %1240 = sbr.rel (%p1238) target = $region32
        $region31: #{tpu_custom_call.1} parent=27 // pred_region
          %s1241 = smul.u32 32, %s16
          %s1242 = ssub.s32 63, %s1241
          %p1243 = scmp.lt.s32.totalorder %s1242, 32
          %s1244 = scalar_select %p1243, %s1242, 32
          %s1245 = smul.u32 128, %s1244
          %s1247 = ssub.s32 4096, %s1245
          %1248 = vsyncadd %s1234, %s1247
          %p1249 = scmp.ne.s32.totalorder 0, %s1245
          %s1250 = smul.addr %s1241, 128
          %s1251 = scalar_lea.hbm %s2, %s1250
          %s1252 = smul.u32 8, %s1244
          %s1253 = sshll.u32 %s1237, 4
          %s1254 = int_to_ptr.vmem [resolvable:$true] %s1253
          %s1255 = sshll.u32 %s1252, 4
          %1259 = dma.vmem_to_hbm [thread:$0]  (%p1249), %s1254, %s1255, %s1251, %s1234, 128, 128, 8
        $region32: #{tpu_custom_call.1} parent=27 // pred_fallthru
          _
      $region28: #{tpu_custom_call.1} parent=5 // pred_fallthru
        _
      %p1260 = scmp.le.s32.totalorder 2, %s11
      // Predicated region
      $region33: #{tpu_custom_call.1} parent=5 // pred_check
        %p1261 = pneg %p1260
      $region34: #{tpu_custom_call.1} parent=5 // pred_check_branch
        %1263 = sbr.rel (%p1261) target = $region36
      $region35: #{tpu_custom_call.1} parent=5 // pred_region
        %s1264 = ssub.s32 %s11, 2
        // Predicated region
        $region37: #{tpu_custom_call.1} parent=35 // pred_check
          %p1265 = pneg %p87
        $region38: #{tpu_custom_call.1} parent=35 // pred_check_branch
          %1267 = sbr.rel (%p1265) target = $region40
        $region39: #{tpu_custom_call.1} parent=35 // pred_region
          %s1268 = sand.u32 %s72, 1
          %s1269 = scalar_lea.sflag [#allocation3], %s1268
          %s1270 = sand.u32 %s72, 1
          %s1271 = smul.addr %s1270, 256
          %s1272 = scalar_lea.vmem [#allocation2], %s1271
          %1273 = dma.done %s1269, 4096
        $region40: #{tpu_custom_call.1} parent=35 // pred_fallthru
          _
      $region36: #{tpu_custom_call.1} parent=5 // pred_fallthru
        _
    $region6: #{tpu_custom_call.1} parent=1 // loop_footer
      %s15 = sadd.s32 1, %s11
    $region7: #{tpu_custom_call.1} parent=1 // loop_footer_branch
      %10 = sbr.rel target = $region3
    $region8: #{tpu_custom_call.1} parent=1 // loop_exit
      _
    %1274 = vsyncpa [#allocation3], 1
    %s1275 = scalar_lea.sflag [#allocation3], 1
    %1276 = vsyncpa %s1275, 1

</llo_original>
